<compile_context>
chip_gen: v6e
topology: v6e:2x2x1
jax: 0.10.0
libtpu: 0.0.40
codegen_flags: <defaults>
</compile_context>

<pallas_src>
import jax
import jax.numpy as jnp
from jax.experimental import pallas as pl
from jax.experimental.pallas import tpu as pltpu


def _round_up(x, m):
    return ((x + m - 1) // m) * m


# ----------------------------------------------------------------------------
# Pallas kernel: fused  gather(ids) -> h = ReLU(x@W1+b1)  (cached in scratch)
#                       out[:, j]   = h @ W2[:, j] + b2[j]
# ----------------------------------------------------------------------------
def _fused_prompt_kernel(idx_ref, emb_ref, w1_ref, b1_ref, w2_ref, b2_ref,
                         o_ref, h_ref):
    # idx_ref : (tm, 1) int32   prompt ids (padded rows carry 0)
    # emb_ref : (V, E)          prompt embedding table (V = prefix length, tiny)
    # w1_ref  : (E, P)   b1_ref : (1, P)   f32 bias
    # w2_ref  : (P, tn)  b2_ref : (1, tn)  f32 bias
    # o_ref   : (tm, tn)
    # h_ref   : (tm, P) f32 scratch: first-layer activations, reused across j.
    @pl.when(pl.program_id(1) == 0)
    def _():
        ids = idx_ref[...]                                        # (tm, 1) int32
        tm, v = ids.shape[0], emb_ref.shape[0]
        # Gather-as-matmul: one_hot(ids) @ table -- exact row selection on MXU,
        # fused with the MLP (no separate XLA gather / HBM round-trip).
        iota = jax.lax.broadcasted_iota(jnp.int32, (tm, v), 1)
        onehot = (iota == ids).astype(emb_ref.dtype)              # (tm, V)
        x = jnp.dot(onehot, emb_ref[...],
                    preferred_element_type=w1_ref.dtype)          # (tm, E)
        h = jnp.dot(x, w1_ref[...],
                    preferred_element_type=jnp.float32)           # (tm, P) f32
        h_ref[...] = jnp.maximum(h + b1_ref[...], 0.0)            # f32 bias+ReLU

    y = jnp.dot(h_ref[...].astype(w2_ref.dtype), w2_ref[...],
                preferred_element_type=jnp.float32)               # (tm, tn) f32
    o_ref[...] = (y + b2_ref[...]).astype(o_ref.dtype)


def prompt_encoder_mlp(prefix_flat, embedding, w1, b1, w2, b2, *,
                       compute_dtype=jnp.bfloat16, out_dtype=jnp.float32,
                       tm=None, tn=None):
    """prefix_flat: (N,) int32 -> (N, O) via fused gather + ReLU-MLP."""
    n = int(prefix_flat.shape[0])
    v, e = embedding.shape
    p = w1.shape[1]
    o = w2.shape[1]
    wbytes = jnp.dtype(compute_dtype).itemsize
    obytes = jnp.dtype(out_dtype).itemsize

    # Generation-aware VMEM budget (v5e/v6e: 128 MiB physical, v7x: 64 MiB).
    try:
        vmem_cap = int(pltpu.get_tpu_info().vmem_capacity_bytes)
    except Exception:
        vmem_cap = 64 * 1024 * 1024                    # conservative (v7x)
    vmem_limit = min(int(vmem_cap * 0.85), 100 * 1024 * 1024)

    # Row tile: one grid step for small N; 512-row (256-multiple) tiles else.
    if tm is None:
        tm = _round_up(n, 8) if n <= 512 else 512
    n_pad = _round_up(n, tm)

    # Single-buffer the big constant-index residents (table, W1) so the
    # pipeline does not duplicate them in VMEM (matters on v7x's 64 MiB).
    big_residents = (v * e + e * p) * wbytes >= (4 << 20)
    resident_bufs = 1 if big_residents else 2

    # Output tile: lane-dense, 256-aligned (full v6e/v7x MXU width; also a
    # 128-multiple for v5e), sized from the remaining VMEM budget.  O is padded
    # up to a multiple of tn and sliced off after the call.
    if tn is None:
        align = 256 if o >= 256 else 128
        usable = int(vmem_limit * 0.7)                       # compiler headroom
        fixed = resident_bufs * (v * e + e * p) * wbytes     # table + W1
        fixed += 2 * p * 4                                   # b1 (f32)
        fixed += tm * p * 4                                  # h scratch (f32)
        fixed += 2 * tm * 128 * 4                            # ids block (lane-padded)
        per_col = 2 * p * wbytes + 2 * tm * obytes + 2 * 4   # W2 + out + b2 per col
        tn_cap = max(usable - fixed, per_col) // per_col
        tn = max(align, (tn_cap // align) * align)
        tn = min(tn, _round_up(o, align))
    assert tn % 128 == 0, tn
    o_pad = _round_up(o, tn)

    idx = jnp.pad(prefix_flat.astype(jnp.int32), (0, n_pad - n)).reshape(n_pad, 1)
    embc = embedding.astype(compute_dtype)
    w1c = w1.astype(compute_dtype)
    w2c = jnp.pad(w2.astype(compute_dtype), ((0, 0), (0, o_pad - o)))
    b1f = b1.reshape(1, p).astype(jnp.float32)
    b2f = jnp.pad(b2.reshape(1, o).astype(jnp.float32), ((0, 0), (0, o_pad - o)))

    def _resident(shape):
        if big_residents:
            return pl.BlockSpec(shape, lambda i, j: (0, 0),
                                pipeline_mode=pl.Buffered(1))
        return pl.BlockSpec(shape, lambda i, j: (0, 0))

    # TODO(synk): on v7x, sweep pipeline_mode=pl.Buffered(3) on the W2/b2 specs
    # if the trace shows exposed W2 DMA time.
    # TODO(synk): v7x megacore over the O axis would need an SMEM "last-seen
    # row tile" guard (scratch is not zero-initialized), so the O axis stays
    # "arbitrary" and only the row axis is "parallel".
    grid = (n_pad // tm, o_pad // tn)
    out = pl.pallas_call(
        _fused_prompt_kernel,
        out_shape=jax.ShapeDtypeStruct((n_pad, o_pad), out_dtype),
        grid_spec=pltpu.PrefetchScalarGridSpec(
            num_scalar_prefetch=0,
            grid=grid,
            in_specs=[
                pl.BlockSpec((tm, 1), lambda i, j: (i, 0)),   # token ids
                _resident((v, e)),                            # prompt table (resident)
                _resident((e, p)),                            # W1 (resident)
                pl.BlockSpec((1, p), lambda i, j: (0, 0)),    # b1 (resident)
                pl.BlockSpec((p, tn), lambda i, j: (0, j)),   # W2 tiled over O
                pl.BlockSpec((1, tn), lambda i, j: (0, j)),   # b2 tiled over O
            ],
            out_specs=pl.BlockSpec((tm, tn), lambda i, j: (i, j)),
            scratch_shapes=[pltpu.VMEM((tm, p), jnp.float32)],
        ),
        compiler_params=pltpu.CompilerParams(
            dimension_semantics=("parallel", "arbitrary"),
            vmem_limit_bytes=vmem_limit),
    )(idx, embc, w1c, b1f, w2c, b2f)
    return out[:n, :o]


# ----------------------------------------------------------------------------
# PromptEncoder in JAX (parameters built deterministically in-script).
# ----------------------------------------------------------------------------
class PromptEncoderParams:
    def __init__(self, key, *, type, length, projection, embed_dim, proj_dim,
                 layers, vocab_size):
        assert type == "prefix"
        self.prefix_projection = projection
        self.layers = layers
        self.embed_dim = embed_dim
        prompt_vocab_size = length
        k0, k1, k2, k3, k4 = jax.random.split(key, 5)
        if projection:
            self.embedding = 0.02 * jax.random.normal(
                k0, (prompt_vocab_size, embed_dim), jnp.float32)
            self.w1 = 0.02 * jax.random.normal(
                k1, (embed_dim, proj_dim), jnp.float32)
            self.b1 = 0.01 * jax.random.normal(k2, (1, proj_dim), jnp.float32)
            self.w2 = 0.02 * jax.random.normal(
                k3, (proj_dim, layers * 2 * embed_dim), jnp.float32)
            self.b2 = 0.01 * jax.random.normal(
                k4, (1, layers * 2 * embed_dim), jnp.float32)
        else:
            self.embedding = 0.02 * jax.random.normal(
                k0, (prompt_vocab_size, layers * 2 * embed_dim), jnp.float32)


def prompt_encoder_forward(params: PromptEncoderParams, prefix: jnp.ndarray,
                           compute_dtype=jnp.bfloat16, out_dtype=jnp.float32):
    """prefix: (B, L) int32 -> (B, L, layers*2*embed_dim)."""
    b, l = prefix.shape
    if params.prefix_projection:
        # Fused gather + MLP in a single Pallas dispatch.  bf16 weight
        # streaming / f32 accumulation by default; pass compute_dtype=f32 for
        # bit-strict parity with the f32 reference.
        out = prompt_encoder_mlp(prefix.reshape(-1), params.embedding,
                                 params.w1, params.b1, params.w2, params.b2,
                                 compute_dtype=compute_dtype, out_dtype=out_dtype)
        return out.reshape(b, l, -1)
    # Pure embedding lookup branch: a plain gather, no compute hot path.
    return params.embedding[prefix.reshape(-1)].reshape(b, l, -1)


# ----------------------------------------------------------------------------
def _reference_forward(params, prefix):
    b, l = prefix.shape
    if params.prefix_projection:
        x = params.embedding[prefix.reshape(-1)]
        h = jnp.maximum(x @ params.w1 + params.b1, 0.0)
        y = h @ params.w2 + params.b2
        return y.reshape(b, l, -1)
    return params.embedding[prefix.reshape(-1)].reshape(b, l, -1)


if __name__ == "__main__":
    key = jax.random.PRNGKey(0)
    kp, kx, kr = jax.random.split(key, 3)

    # Small config consistent with the module:
    #   type='prefix', length=8, projection=True, embed_dim=32, proj_dim=64,
    #   layers=2, vocab_size unused on this path.
    B, L = 2, 8
    EMBED_DIM, PROJ_DIM, LAYERS = 32, 64, 2

    params = PromptEncoderParams(
        kp, type="prefix", length=L, projection=True,
        embed_dim=EMBED_DIM, proj_dim=PROJ_DIM, layers=LAYERS, vocab_size=1000)

    prefix = jax.random.randint(kx, (B, L), 0, L, dtype=jnp.int32)
    ref = _reference_forward(params, prefix)

    # Strict f32 path (exact parity with the reference within 1e-5).
    out = jax.block_until_ready(
        prompt_encoder_forward(params, prefix, compute_dtype=jnp.float32))
    assert out.shape == (B, L, LAYERS * 2 * EMBED_DIM), out.shape
    assert jnp.allclose(out, ref, atol=1e-5, rtol=1e-5), \
        float(jnp.max(jnp.abs(out - ref)))

    # Default fast path (bf16 weight streaming, f32 accumulation): loose check.
    out_bf = jax.block_until_ready(prompt_encoder_forward(params, prefix))
    assert out_bf.shape == (B, L, LAYERS * 2 * EMBED_DIM), out_bf.shape
    assert jnp.allclose(out_bf, ref, atol=2e-2, rtol=2e-2), \
        float(jnp.max(jnp.abs(out_bf - ref)))

    # Ragged row count (B*L not a multiple of 8) exercises the row-padding path.
    prefix_r = jax.random.randint(kr, (3, 7), 0, L, dtype=jnp.int32)
    out_r = jax.block_until_ready(
        prompt_encoder_forward(params, prefix_r, compute_dtype=jnp.float32))
    ref_r = _reference_forward(params, prefix_r)
    assert out_r.shape == (3, 7, LAYERS * 2 * EMBED_DIM), out_r.shape
    assert jnp.allclose(out_r, ref_r, atol=1e-5, rtol=1e-5), \
        float(jnp.max(jnp.abs(out_r - ref_r)))

    # Non-projection branch (pure embedding lookup).
    params_np = PromptEncoderParams(
        kp, type="prefix", length=L, projection=False,
        embed_dim=EMBED_DIM, proj_dim=PROJ_DIM, layers=LAYERS, vocab_size=1000)
    out_np = jax.block_until_ready(prompt_encoder_forward(params_np, prefix))
    ref_np = _reference_forward(params_np, prefix)
    assert jnp.allclose(out_np, ref_np), "non-projection branch mismatch"

    print("KERNEL_OK")
</pallas_src>

<mosaic_0001>
module attributes {stable_mosaic.version = 11 : i64} {
  func.func @_fused_prompt_kernel(%arg0: i32, %arg1: i32, %arg2: memref<16x1xi32, #tpu.memory_space<vmem>>, %arg3: memref<8x32xf32, #tpu.memory_space<vmem>>, %arg4: memref<32x64xf32, #tpu.memory_space<vmem>>, %arg5: memref<1x64xf32, #tpu.memory_space<vmem>>, %arg6: memref<64x128xf32, #tpu.memory_space<vmem>>, %arg7: memref<1x128xf32, #tpu.memory_space<vmem>>, %arg8: memref<16x128xf32, #tpu.memory_space<vmem>>, %arg9: memref<16x64xf32, #tpu.memory_space<vmem>>) attributes {dimension_semantics = [#tpu.dimension_semantics<parallel>, #tpu.dimension_semantics<arbitrary>], iteration_bounds = array<i64: 1, 1>, scalar_prefetch = 0 : i64, scratch_operands = 1 : i64, tpu.core_type = #tpu.core_type<tc>, window_params = [{transform_indices = @transform_0, window_bounds = array<i64: 16, 1>}, {pipeline_mode = #tpu.pipeline_mode<synchronous>, transform_indices = @transform_1, window_bounds = array<i64: 8, 32>}, {pipeline_mode = #tpu.pipeline_mode<synchronous>, transform_indices = @transform_2, window_bounds = array<i64: 32, 64>}, {pipeline_mode = #tpu.pipeline_mode<synchronous>, transform_indices = @transform_3, window_bounds = array<i64: 1, 64>}, {transform_indices = @transform_4, window_bounds = array<i64: 64, 128>}, {transform_indices = @transform_5, window_bounds = array<i64: 1, 128>}, {transform_indices = @transform_6, window_bounds = array<i64: 16, 128>}]} {
    %c0_i32 = arith.constant 0 : i32
    %0 = arith.cmpi eq, %arg1, %c0_i32 : i32
    %1 = arith.extui %0 : i1 to i32
    %c0_i32_0 = arith.constant 0 : i32
    %2 = arith.cmpi ne, %1, %c0_i32_0 : i32
    scf.if %2 {
      %c0_8 = arith.constant 0 : index
      %c0_9 = arith.constant 0 : index
      %10 = vector.load %arg2[%c0_8, %c0_9] : memref<16x1xi32, #tpu.memory_space<vmem>>, vector<16x1xi32>
      %11 = tpu.iota {dimensions = array<i32: 1>} : vector<16x8xi32>
      %12 = vector.broadcast %10 : vector<16x1xi32> to vector<16x8xi32>
      %13 = arith.cmpi eq, %11, %12 : vector<16x8xi32>
      %14 = arith.extui %13 : vector<16x8xi1> to vector<16x8xi32>
      %15 = arith.sitofp %14 : vector<16x8xi32> to vector<16x8xf32>
      %c0_10 = arith.constant 0 : index
      %c0_11 = arith.constant 0 : index
      %16 = vector.load %arg3[%c0_10, %c0_11] : memref<8x32xf32, #tpu.memory_space<vmem>>, vector<8x32xf32>
      %cst_12 = arith.constant dense<0.000000e+00> : vector<16x32xf32>
      %17 = tpu.matmul %15, %16, %cst_12 {dimension_numbers = #tpu.dot_dimension_numbers<[1], [0], [0], [1], [0, 0, 1, 1], [], []>} : vector<16x8xf32>, vector<8x32xf32>, vector<16x32xf32> -> vector<16x32xf32>
      %c0_13 = arith.constant 0 : index
      %c0_14 = arith.constant 0 : index
      %18 = vector.load %arg4[%c0_13, %c0_14] : memref<32x64xf32, #tpu.memory_space<vmem>>, vector<32x64xf32>
      %cst_15 = arith.constant dense<0.000000e+00> : vector<16x64xf32>
      %19 = tpu.matmul %17, %18, %cst_15 {dimension_numbers = #tpu.dot_dimension_numbers<[1], [0], [0], [1], [0, 0, 1, 1], [], []>} : vector<16x32xf32>, vector<32x64xf32>, vector<16x64xf32> -> vector<16x64xf32>
      %c0_16 = arith.constant 0 : index
      %c0_17 = arith.constant 0 : index
      %20 = vector.load %arg5[%c0_16, %c0_17] : memref<1x64xf32, #tpu.memory_space<vmem>>, vector<1x64xf32>
      %21 = vector.broadcast %20 : vector<1x64xf32> to vector<16x64xf32>
      %22 = arith.addf %19, %21 : vector<16x64xf32>
      %cst_18 = arith.constant 0.000000e+00 : f32
      %23 = vector.broadcast %cst_18 : f32 to vector<16x64xf32>
      %24 = arith.maximumf %22, %23 : vector<16x64xf32>
      %c0_19 = arith.constant 0 : index
      %c0_20 = arith.constant 0 : index
      %25 = vector.load %arg9[%c0_19, %c0_20] : memref<16x64xf32, #tpu.memory_space<vmem>>, vector<16x64xf32>
      tpu.vector_store %arg9[%c0_19, %c0_20], %24 {strides = array<i32>} : memref<16x64xf32, #tpu.memory_space<vmem>>, vector<16x64xf32>,
    } else {
    }
    %c0 = arith.constant 0 : index
    %c0_1 = arith.constant 0 : index
    %3 = vector.load %arg9[%c0, %c0_1] : memref<16x64xf32, #tpu.memory_space<vmem>>, vector<16x64xf32>
    %c0_2 = arith.constant 0 : index
    %c0_3 = arith.constant 0 : index
    %4 = vector.load %arg6[%c0_2, %c0_3] : memref<64x128xf32, #tpu.memory_space<vmem>>, vector<64x128xf32>
    %cst = arith.constant dense<0.000000e+00> : vector<16x128xf32>
    %5 = tpu.matmul %3, %4, %cst {dimension_numbers = #tpu.dot_dimension_numbers<[1], [0], [0], [1], [0, 0, 1, 1], [], []>} : vector<16x64xf32>, vector<64x128xf32>, vector<16x128xf32> -> vector<16x128xf32>
    %c0_4 = arith.constant 0 : index
    %c0_5 = arith.constant 0 : index
    %6 = vector.load %arg7[%c0_4, %c0_5] : memref<1x128xf32, #tpu.memory_space<vmem>>, vector<1x128xf32>
    %7 = vector.broadcast %6 : vector<1x128xf32> to vector<16x128xf32>
    %8 = arith.addf %5, %7 : vector<16x128xf32>
    %c0_6 = arith.constant 0 : index
    %c0_7 = arith.constant 0 : index
    %9 = vector.load %arg8[%c0_6, %c0_7] : memref<16x128xf32, #tpu.memory_space<vmem>>, vector<16x128xf32>
    tpu.vector_store %arg8[%c0_6, %c0_7], %8 {strides = array<i32>} : memref<16x128xf32, #tpu.memory_space<vmem>>, vector<16x128xf32>,
    return
  }
  func.func @transform_0(%arg0: i32, %arg1: i32) -> (i32, i32) {
    %c0_i32 = arith.constant 0 : i32
    %c0_i32_0 = arith.constant 0 : i32
    return %arg0, %c0_i32 : i32, i32
  }
  func.func @transform_1(%arg0: i32, %arg1: i32) -> (i32, i32) {
    %c0_i32 = arith.constant 0 : i32
    %c0_i32_0 = arith.constant 0 : i32
    %c0_i32_1 = arith.constant 0 : i32
    return %c0_i32, %c0_i32_0 : i32, i32
  }
  func.func @transform_2(%arg0: i32, %arg1: i32) -> (i32, i32) {
    %c0_i32 = arith.constant 0 : i32
    %c0_i32_0 = arith.constant 0 : i32
    %c0_i32_1 = arith.constant 0 : i32
    return %c0_i32, %c0_i32_0 : i32, i32
  }
  func.func @transform_3(%arg0: i32, %arg1: i32) -> (i32, i32) {
    %c0_i32 = arith.constant 0 : i32
    %c0_i32_0 = arith.constant 0 : i32
    %c0_i32_1 = arith.constant 0 : i32
    return %c0_i32, %c0_i32_0 : i32, i32
  }
  func.func @transform_4(%arg0: i32, %arg1: i32) -> (i32, i32) {
    %c0_i32 = arith.constant 0 : i32
    %c0_i32_0 = arith.constant 0 : i32
    return %c0_i32, %arg1 : i32, i32
  }
  func.func @transform_5(%arg0: i32, %arg1: i32) -> (i32, i32) {
    %c0_i32 = arith.constant 0 : i32
    %c0_i32_0 = arith.constant 0 : i32
    return %c0_i32, %arg1 : i32, i32
  }
  func.func @transform_6(%arg0: i32, %arg1: i32) -> (i32, i32) {
    %c0_i32 = arith.constant 0 : i32
    return %arg0, %arg1 : i32, i32
  }
}

</mosaic_0001>

<llo_original>
// kernel: tpu_custom_call.1
$region0: #{tpu_custom_call.1}
  #allocation0 [shape = 'u32[]', space=smem, size = 0x4, offset = 0x4, fixed_abs, tag = 'smem constant byte address 0x4 - core index']
  #allocation1 [shape = 'u32[144,128]{1,0:T(1,128)}', space=vmem, size = 0x12000, scoped, tag = 'internal scratch']
  #allocation2 [shape = 'f32[16,64]{1,0:T(8,128)}', space=vmem, size = 0x2000, scoped, tag = 'scratch operand']
  %s0 = inlined_call_operand.vmem [shape: s32[16,1], index: 0, kind: input, shape index: {}]
  %s1 = inlined_call_operand.vmem [shape: f32[8,32], index: 1, kind: input, shape index: {}]
  %s2 = inlined_call_operand.hbm [shape: f32[32,64], index: 2, kind: input, shape index: {}]
  %s3 = inlined_call_operand.vmem [shape: f32[1,64], index: 3, kind: input, shape index: {}]
  %s4 = inlined_call_operand.hbm [shape: f32[64,128], index: 4, kind: input, shape index: {}]
  %s5 = inlined_call_operand.vmem [shape: f32[1,128], index: 5, kind: input, shape index: {}]
  %s6 = inlined_call_operand.hbm [shape: f32[16,128], index: 6, kind: output, shape index: {}]
  %s7 = sld [smem:[#allocation0]]
  $region46: #{tpu_custom_call.1} parent=0
    _
  %s9 = ssub.s32 1, %s7
  %s10 = scalar_select 0, %s9, %s7
  $region1: #{tpu_custom_call.1} parent=0
    #allocation3 [shape = 'u8[16384]{0}', space=vmem, size = 0x4000, scoped, tag = 'input window, operand 2, single buffered']
    #allocation4 [shape = 's32[1]{0}', space=sflag, size = 0x4, scoped, tag = 'scoped memory for tpu_custom_call.1']
    #allocation5 [shape = 's32[1]{0}', space=sflag, size = 0x4, scoped, tag = 'scoped memory for tpu_custom_call.1']
    #allocation6 [shape = 'u8[32768]{0}', space=vmem, size = 0x8000, scoped, tag = 'input window, operand 4, single buffered']
    #allocation7 [shape = 's32[1]{0}', space=sflag, size = 0x4, scoped, tag = 'scoped memory for tpu_custom_call.1']
    #allocation8 [shape = 'u8[8192]{0}', space=vmem, size = 0x2000, scoped, tag = 'output window, operand 0, single buffered']
    %11 = vsyncpa [#allocation4], 0
    %12 = vsyncpa [#allocation7], 0
    %13 = vsyncpa [#allocation5], 0
    // Predicated region
    $region2: #{tpu_custom_call.1} parent=1 // pred_check
      _
    $region3: #{tpu_custom_call.1} parent=1 // pred_check_branch
      %15 = sbr.rel (0) target = $region5
    $region4: #{tpu_custom_call.1} parent=1 // pred_region
      _
    $region5: #{tpu_custom_call.1} parent=1 // pred_fallthru
      _
    // Predicated region
    $region6: #{tpu_custom_call.1} parent=1 // pred_check
      _
    $region7: #{tpu_custom_call.1} parent=1 // pred_check_branch
      %17 = sbr.rel (0) target = $region9
    $region8: #{tpu_custom_call.1} parent=1 // pred_region
      _
    $region9: #{tpu_custom_call.1} parent=1 // pred_fallthru
      _
    // Predicated region
    $region10: #{tpu_custom_call.1} parent=1 // pred_check
      _
    $region11: #{tpu_custom_call.1} parent=1 // pred_check_branch
      %19 = sbr.rel (0) target = $region13
    $region12: #{tpu_custom_call.1} parent=1 // pred_region
      %s21 = ssub.s32 512, 512
      %22 = vsyncadd [#allocation4], %s21
      %s23 = sshll.u32 [#allocation3], 4
      %s24 = int_to_ptr.vmem [resolvable:$true] %s23
      %29 = dma.hbm_to_vmem [thread:$0]  %s2, 512, %s24, [#allocation4], 128, 128, 8
    $region13: #{tpu_custom_call.1} parent=1 // pred_fallthru
      _
    // Predicated region
    $region14: #{tpu_custom_call.1} parent=1 // pred_check
      _
    $region15: #{tpu_custom_call.1} parent=1 // pred_check_branch
      %31 = sbr.rel (0) target = $region17
    $region16: #{tpu_custom_call.1} parent=1 // pred_region
      _
    $region17: #{tpu_custom_call.1} parent=1 // pred_fallthru
      _
    // Predicated region
    $region18: #{tpu_custom_call.1} parent=1 // pred_check
      _
    $region19: #{tpu_custom_call.1} parent=1 // pred_check_branch
      %33 = sbr.rel (0) target = $region21
    $region20: #{tpu_custom_call.1} parent=1 // pred_region
      %s35 = ssub.s32 1024, 1024
      %36 = vsyncadd [#allocation7], %s35
      %s37 = sshll.u32 [#allocation6], 4
      %s38 = int_to_ptr.vmem [resolvable:$true] %s37
      %43 = dma.hbm_to_vmem [thread:$0]  %s4, 1024, %s38, [#allocation7], 128, 128, 8
    $region21: #{tpu_custom_call.1} parent=1 // pred_fallthru
      _
    // Predicated region
    $region22: #{tpu_custom_call.1} parent=1 // pred_check
      _
    $region23: #{tpu_custom_call.1} parent=1 // pred_check_branch
      %45 = sbr.rel (0) target = $region25
    $region24: #{tpu_custom_call.1} parent=1 // pred_region
      _
    $region25: #{tpu_custom_call.1} parent=1 // pred_fallthru
      _
    // Predicated region
    $region26: #{tpu_custom_call.1} parent=1 // pred_check
      _
    $region27: #{tpu_custom_call.1} parent=1 // pred_check_branch
      %47 = sbr.rel (0) target = $region29
    $region28: #{tpu_custom_call.1} parent=1 // pred_region
      %48 = dma.done [#allocation4], 512
    $region29: #{tpu_custom_call.1} parent=1 // pred_fallthru
      _
    // Predicated region
    $region30: #{tpu_custom_call.1} parent=1 // pred_check
      _
    $region31: #{tpu_custom_call.1} parent=1 // pred_check_branch
      %50 = sbr.rel (0) target = $region33
    $region32: #{tpu_custom_call.1} parent=1 // pred_region
      %51 = dma.done [#allocation7], 1024
    $region33: #{tpu_custom_call.1} parent=1 // pred_fallthru
      _
    %p52 = scmp.eq.s32.totalorder 0, 0
    // Predicated region
    $region34: #{tpu_custom_call.1} parent=1 // pred_check
      %p53 = pneg %p52
    $region35: #{tpu_custom_call.1} parent=1 // pred_check_branch
      %55 = sbr.rel (%p53) target = $region37
    $region36: #{tpu_custom_call.1} parent=1 // pred_region
      %v56 = vld [vmem:[%s0] sm:$0xff]
      %v57 = vld [vmem:[%s0 + $0x8] sm:$0xff]
      %v58 = vlaneseq
      %v59 = vand.u32 %v58, 127
      %60 = vset.pattern.permute.xlu0 0
      %61 = vperm.xlu0 %60, %v56
      %v62 = vpop.permute.xlu0 %61
      %63 = vset.pattern.permute.xlu0 0
      %64 = vperm.xlu0 %63, %v57
      %v65 = vpop.permute.xlu0 %64
      %vm66 = vcmp.eq.s32.totalorder %v59, %v62
      %vm67 = vcmp.eq.s32.totalorder %v59, %v65
      %v68 = vsel %vm66, 1, 0
      %v69 = vsel %vm67, 1, 0
      %v70 = vcvt.s32.f32 %v68
      %v71 = vcvt.s32.f32 %v69
      %v72 = vld [vmem:[%s1] sm:$0xff]
      %vm73 = vcmask 64512
      %v75 = vsel %vm73, %v70, 0
      %v78 = vsel %vm73, %v71, 0
      %80 = vmatprep.subr.mxu0 0.0
      %81 = vmatpush1.msra.mxu0 0.0
      %82 = vmatprep.subr.mxu0 0.0
      %83 = vmatpush1.msra.mxu0 0.0
      %84 = vmatprep.subr.mxu0 0.0
      %85 = vmatpush1.msra.mxu0 0.0
      %86 = vmatprep.subr.mxu0 0.0
      %87 = vmatpush1.msra.mxu0 0.0
      %88 = vmatprep.subr.mxu0 0.0
      %89 = vmatpush1.msra.mxu0 0.0
      %90 = vmatprep.subr.mxu0 0.0
      %91 = vmatpush1.msra.mxu0 0.0
      %92 = vmatprep.subr.mxu0 0.0
      %93 = vmatpush1.msra.mxu0 0.0
      %94 = vmatprep.subr.mxu0 0.0
      %95 = vmatpush1.msra.mxu0 0.0
      %96 = vmatprep.subr.mxu0 0.0
      %97 = vmatpush1.msra.mxu0 0.0
      %98 = vmatprep.subr.mxu0 0.0
      %99 = vmatpush1.msra.mxu0 0.0
      %100 = vmatprep.subr.mxu0 0.0
      %101 = vmatpush1.msra.mxu0 0.0
      %102 = vmatprep.subr.mxu0 0.0
      %103 = vmatpush1.msra.mxu0 0.0
      %104 = vmatprep.subr.mxu0 0.0
      %105 = vmatpush1.msra.mxu0 0.0
      %106 = vmatprep.subr.mxu0 0.0
      %107 = vmatpush1.msra.mxu0 0.0
      %108 = vmatprep.subr.mxu0 0.0
      %109 = vmatpush1.msra.mxu0 0.0
      %110 = vmatprep.subr.mxu0 0.0
      %111 = vmatpush1.msra.mxu0 %v72
      %112 = vmatprep.subr.mxu0 0.0
      %113 = vmatpush2.msra.mxu0 0.0
      %114 = vmatprep.subr.mxu0 0.0
      %115 = vmatpush2.msra.mxu0 0.0
      %116 = vmatprep.subr.mxu0 0.0
      %117 = vmatpush2.msra.mxu0 0.0
      %118 = vmatprep.subr.mxu0 0.0
      %119 = vmatpush2.msra.mxu0 0.0
      %120 = vmatprep.subr.mxu0 0.0
      %121 = vmatpush2.msra.mxu0 0.0
      %122 = vmatprep.subr.mxu0 0.0
      %123 = vmatpush2.msra.mxu0 0.0
      %124 = vmatprep.subr.mxu0 0.0
      %125 = vmatpush2.msra.mxu0 0.0
      %126 = vmatprep.subr.mxu0 0.0
      %127 = vmatpush2.msra.mxu0 0.0
      %128 = vmatprep.subr.mxu0 0.0
      %129 = vmatpush2.msra.mxu0 0.0
      %130 = vmatprep.subr.mxu0 0.0
      %131 = vmatpush2.msra.mxu0 0.0
      %132 = vmatprep.subr.mxu0 0.0
      %133 = vmatpush2.msra.mxu0 0.0
      %134 = vmatprep.subr.mxu0 0.0
      %135 = vmatpush2.msra.mxu0 0.0
      %136 = vmatprep.subr.mxu0 0.0
      %137 = vmatpush2.msra.mxu0 0.0
      %138 = vmatprep.subr.mxu0 0.0
      %139 = vmatpush2.msra.mxu0 0.0
      %140 = vmatprep.subr.mxu0 0.0
      %141 = vmatpush2.msra.mxu0 0.0
      %142 = vmatprep.subr.mxu0 0.0
      %143 = vmatpush2.msra.mxu0 0.0
      %144 = vmatprep.mubr.f32.mxu0 0.0
      %145 = vmatmul.mubr.f32.gmra.mxu0 %v75
      %v146 = vpop.f32.mrf.mxu0
      %v147 = vadd.f32 0.0, %v146
      %v148 = vpop.f32.mrf.mxu0
      %149 = vmatprep.mubr.f32.mxu0 0.0
      %150 = vmatmul.mubr.f32.gmra.mxu0 %v78
      %v151 = vpop.f32.mrf.mxu0
      %v152 = vadd.f32 0.0, %v151
      %v153 = vpop.f32.mrf.mxu0
      %154 = vdwg.mxu0
      %v155 = vld [vmem:[#allocation3] sm:$0xff]
      %v156 = vld [vmem:[#allocation3 + $0x8] sm:$0xff]
      %v157 = vld [vmem:[#allocation3 + $0x10] sm:$0xff]
      %v158 = vld [vmem:[#allocation3 + $0x18] sm:$0xff]
      %v159 = vld [vmem:[%s3] sm:$0x1]
      %v161 = vlaneseq
      %v162 = vshrl.u32 %v161, 7
      %v163 = vsub.s32 0, %v162
      %v164 = vrot.slane %v159, %v163
      %vm166 = vcmask 261120
      %v168 = vsel %vm166, %v147, 0
      %v171 = vsel %vm166, %v152, 0
      %173 = vmatprep.subr.mxu0 0.0
      %174 = vmatpush1.msra.mxu0 0.0
      %175 = vmatprep.subr.mxu0 0.0
      %176 = vmatpush1.msra.mxu0 0.0
      %177 = vmatprep.subr.mxu0 0.0
      %178 = vmatpush1.msra.mxu0 0.0
      %179 = vmatprep.subr.mxu0 0.0
      %180 = vmatpush1.msra.mxu0 0.0
      %181 = vmatprep.subr.mxu0 0.0
      %182 = vmatpush1.msra.mxu0 0.0
      %183 = vmatprep.subr.mxu0 0.0
      %184 = vmatpush1.msra.mxu0 0.0
      %185 = vmatprep.subr.mxu0 0.0
      %186 = vmatpush1.msra.mxu0 0.0
      %187 = vmatprep.subr.mxu0 0.0
      %188 = vmatpush1.msra.mxu0 0.0
      %189 = vmatprep.subr.mxu0 0.0
      %190 = vmatpush1.msra.mxu0 0.0
      %191 = vmatprep.subr.mxu0 0.0
      %192 = vmatpush1.msra.mxu0 0.0
      %193 = vmatprep.subr.mxu0 0.0
      %194 = vmatpush1.msra.mxu0 0.0
      %195 = vmatprep.subr.mxu0 0.0
      %196 = vmatpush1.msra.mxu0 0.0
      %197 = vmatprep.subr.mxu0 0.0
      %198 = vmatpush1.msra.mxu0 %v158
      %199 = vmatprep.subr.mxu0 0.0
      %200 = vmatpush1.msra.mxu0 %v157
      %201 = vmatprep.subr.mxu0 0.0
      %202 = vmatpush1.msra.mxu0 %v156
      %203 = vmatprep.subr.mxu0 0.0
      %204 = vmatpush1.msra.mxu0 %v155
      %205 = vmatprep.subr.mxu0 0.0
      %206 = vmatpush2.msra.mxu0 0.0
      %207 = vmatprep.subr.mxu0 0.0
      %208 = vmatpush2.msra.mxu0 0.0
      %209 = vmatprep.subr.mxu0 0.0
      %210 = vmatpush2.msra.mxu0 0.0
      %211 = vmatprep.subr.mxu0 0.0
      %212 = vmatpush2.msra.mxu0 0.0
      %213 = vmatprep.subr.mxu0 0.0
      %214 = vmatpush2.msra.mxu0 0.0
      %215 = vmatprep.subr.mxu0 0.0
      %216 = vmatpush2.msra.mxu0 0.0
      %217 = vmatprep.subr.mxu0 0.0
      %218 = vmatpush2.msra.mxu0 0.0
      %219 = vmatprep.subr.mxu0 0.0
      %220 = vmatpush2.msra.mxu0 0.0
      %221 = vmatprep.subr.mxu0 0.0
      %222 = vmatpush2.msra.mxu0 0.0
      %223 = vmatprep.subr.mxu0 0.0
      %224 = vmatpush2.msra.mxu0 0.0
      %225 = vmatprep.subr.mxu0 0.0
      %226 = vmatpush2.msra.mxu0 0.0
      %227 = vmatprep.subr.mxu0 0.0
      %228 = vmatpush2.msra.mxu0 0.0
      %229 = vmatprep.subr.mxu0 0.0
      %230 = vmatpush2.msra.mxu0 0.0
      %231 = vmatprep.subr.mxu0 0.0
      %232 = vmatpush2.msra.mxu0 0.0
      %233 = vmatprep.subr.mxu0 0.0
      %234 = vmatpush2.msra.mxu0 0.0
      %235 = vmatprep.subr.mxu0 0.0
      %236 = vmatpush2.msra.mxu0 0.0
      %237 = vmatprep.mubr.f32.mxu0 0.0
      %238 = vmatmul.mubr.f32.gmra.mxu0 %v168
      %v239 = vpop.f32.mrf.mxu0
      %v240 = vadd.f32 %v164, %v239
      %v241 = vpop.f32.mrf.mxu0
      %242 = vmatprep.mubr.f32.mxu0 0.0
      %243 = vmatmul.mubr.f32.gmra.mxu0 %v171
      %v244 = vpop.f32.mrf.mxu0
      %v245 = vadd.f32 %v164, %v244
      %v246 = vpop.f32.mrf.mxu0
      %247 = vdwg.mxu0
      %v248 = vmax.f32 %v240, 0.0
      %v249 = vmax.f32 %v245, 0.0
      %vm250 = vcmask 523264
      %251 = vst.msk [vmem:[#allocation2] sm:$0xff] %vm250, %v248
      %252 = vst.msk [vmem:[#allocation2 + $0x8] sm:$0xff] %vm250, %v249
    $region37: #{tpu_custom_call.1} parent=1 // pred_fallthru
      _
    %v253 = vld [vmem:[#allocation2] sm:$0xff]
    %v254 = vld [vmem:[#allocation2 + $0x8] sm:$0xff]
    %v255 = vld [vmem:[#allocation6] sm:$0xff]
    %v256 = vld [vmem:[#allocation6 + $0x8] sm:$0xff]
    %v257 = vld [vmem:[#allocation6 + $0x10] sm:$0xff]
    %v258 = vld [vmem:[#allocation6 + $0x18] sm:$0xff]
    %v259 = vld [vmem:[#allocation6 + $0x20] sm:$0xff]
    %v260 = vld [vmem:[#allocation6 + $0x28] sm:$0xff]
    %v261 = vld [vmem:[#allocation6 + $0x30] sm:$0xff]
    %v262 = vld [vmem:[#allocation6 + $0x38] sm:$0xff]
    %v263 = vld [vmem:[%s5] sm:$0x1]
    %v265 = vlaneseq
    %v266 = vshrl.u32 %v265, 7
    %v267 = vsub.s32 0, %v266
    %v268 = vrot.slane %v263, %v267
    %vm270 = vcmask 523264
    %v272 = vsel %vm270, %v253, 0
    %v275 = vsel %vm270, %v254, 0
    %277 = vmatprep.subr.mxu0 0.0
    %278 = vmatpush1.msra.mxu0 0.0
    %279 = vmatprep.subr.mxu0 0.0
    %280 = vmatpush1.msra.mxu0 0.0
    %281 = vmatprep.subr.mxu0 0.0
    %282 = vmatpush1.msra.mxu0 0.0
    %283 = vmatprep.subr.mxu0 0.0
    %284 = vmatpush1.msra.mxu0 0.0
    %285 = vmatprep.subr.mxu0 0.0
    %286 = vmatpush1.msra.mxu0 0.0
    %287 = vmatprep.subr.mxu0 0.0
    %288 = vmatpush1.msra.mxu0 0.0
    %289 = vmatprep.subr.mxu0 0.0
    %290 = vmatpush1.msra.mxu0 0.0
    %291 = vmatprep.subr.mxu0 0.0
    %292 = vmatpush1.msra.mxu0 0.0
    %293 = vmatprep.subr.mxu0 0.0
    %294 = vmatpush1.msra.mxu0 %v262
    %295 = vmatprep.subr.mxu0 0.0
    %296 = vmatpush1.msra.mxu0 %v261
    %297 = vmatprep.subr.mxu0 0.0
    %298 = vmatpush1.msra.mxu0 %v260
    %299 = vmatprep.subr.mxu0 0.0
    %300 = vmatpush1.msra.mxu0 %v259
    %301 = vmatprep.subr.mxu0 0.0
    %302 = vmatpush1.msra.mxu0 %v258
    %303 = vmatprep.subr.mxu0 0.0
    %304 = vmatpush1.msra.mxu0 %v257
    %305 = vmatprep.subr.mxu0 0.0
    %306 = vmatpush1.msra.mxu0 %v256
    %307 = vmatprep.subr.mxu0 0.0
    %308 = vmatpush1.msra.mxu0 %v255
    %309 = vmatprep.subr.mxu0 0.0
    %310 = vmatpush2.msra.mxu0 0.0
    %311 = vmatprep.subr.mxu0 0.0
    %312 = vmatpush2.msra.mxu0 0.0
    %313 = vmatprep.subr.mxu0 0.0
    %314 = vmatpush2.msra.mxu0 0.0
    %315 = vmatprep.subr.mxu0 0.0
    %316 = vmatpush2.msra.mxu0 0.0
    %317 = vmatprep.subr.mxu0 0.0
    %318 = vmatpush2.msra.mxu0 0.0
    %319 = vmatprep.subr.mxu0 0.0
    %320 = vmatpush2.msra.mxu0 0.0
    %321 = vmatprep.subr.mxu0 0.0
    %322 = vmatpush2.msra.mxu0 0.0
    %323 = vmatprep.subr.mxu0 0.0
    %324 = vmatpush2.msra.mxu0 0.0
    %325 = vmatprep.subr.mxu0 0.0
    %326 = vmatpush2.msra.mxu0 0.0
    %327 = vmatprep.subr.mxu0 0.0
    %328 = vmatpush2.msra.mxu0 0.0
    %329 = vmatprep.subr.mxu0 0.0
    %330 = vmatpush2.msra.mxu0 0.0
    %331 = vmatprep.subr.mxu0 0.0
    %332 = vmatpush2.msra.mxu0 0.0
    %333 = vmatprep.subr.mxu0 0.0
    %334 = vmatpush2.msra.mxu0 0.0
    %335 = vmatprep.subr.mxu0 0.0
    %336 = vmatpush2.msra.mxu0 0.0
    %337 = vmatprep.subr.mxu0 0.0
    %338 = vmatpush2.msra.mxu0 0.0
    %339 = vmatprep.subr.mxu0 0.0
    %340 = vmatpush2.msra.mxu0 0.0
    %341 = vmatprep.mubr.f32.mxu0 0.0
    %342 = vmatmul.mubr.f32.gmra.mxu0 %v272
    %v343 = vpop.f32.mrf.mxu0
    %v344 = vadd.f32 %v268, %v343
    %v345 = vpop.f32.mrf.mxu0
    %346 = vmatprep.mubr.f32.mxu0 0.0
    %347 = vmatmul.mubr.f32.gmra.mxu0 %v275
    %v348 = vpop.f32.mrf.mxu0
    %v349 = vadd.f32 %v268, %v348
    %v350 = vpop.f32.mrf.mxu0
    %351 = vdwg.mxu0
    %352 = vst [vmem:[#allocation8] sm:$0xff] %v344
    %353 = vst [vmem:[#allocation8 + $0x8] sm:$0xff] %v349
    // Predicated region
    $region38: #{tpu_custom_call.1} parent=1 // pred_check
      _
    $region39: #{tpu_custom_call.1} parent=1 // pred_check_branch
      %355 = sbr.rel (0) target = $region41
    $region40: #{tpu_custom_call.1} parent=1 // pred_region
      %s357 = ssub.s32 256, 256
      %358 = vsyncadd [#allocation5], %s357
      %s359 = sshll.u32 [#allocation8], 4
      %s360 = int_to_ptr.vmem [resolvable:$true] %s359
      %365 = dma.vmem_to_hbm [thread:$0]  %s360, 256, %s6, [#allocation5], 128, 128, 8
    $region41: #{tpu_custom_call.1} parent=1 // pred_fallthru
      _
    // Predicated region
    $region42: #{tpu_custom_call.1} parent=1 // pred_check
      _
    $region43: #{tpu_custom_call.1} parent=1 // pred_check_branch
      %367 = sbr.rel (0) target = $region45
    $region44: #{tpu_custom_call.1} parent=1 // pred_region
      %368 = dma.done [#allocation5], 256
    $region45: #{tpu_custom_call.1} parent=1 // pred_fallthru
      _
    %369 = vsyncpa [#allocation4], 1
    %370 = vsyncpa [#allocation7], 1
    %371 = vsyncpa [#allocation5], 1

</llo_original>
